<compile_context>
chip_gen: v7x
topology: tpu7x:2x2x1
jax: 0.10.0
libtpu: 0.0.40
codegen_flags: <defaults>
</compile_context>

<pallas_src>
import jax
import jax.numpy as jnp
from jax.experimental import pallas as pl
from jax.experimental.pallas import tpu as pltpu


def _round_up(n: int, m: int) -> int:
    return ((n + m - 1) // m) * m


def mlp_kernel(x_ref, w1_ref, b1_ref, w2_ref, b2_ref,
               w3_ref, b3_ref, w4_ref, b4_ref, o_ref):
    """One batch tile of the fused 4-layer MLP.

    x / weights are bf16 (narrow HBM stream), all dots accumulate in f32 on the
    MXU, bias-add + ReLU happen in f32 on the VPU, and activations are cast
    back to bf16 only to feed the next MXU pass.
    """
    h = jnp.dot(x_ref[...], w1_ref[...], preferred_element_type=jnp.float32)
    h = jnp.maximum(h + b1_ref[...], 0.0)

    h = jnp.dot(h.astype(jnp.bfloat16), w2_ref[...],
                preferred_element_type=jnp.float32)
    h = jnp.maximum(h + b2_ref[...], 0.0)

    h = jnp.dot(h.astype(jnp.bfloat16), w3_ref[...],
                preferred_element_type=jnp.float32)
    h = jnp.maximum(h + b3_ref[...], 0.0)

    out = jnp.dot(h.astype(jnp.bfloat16), w4_ref[...],
                  preferred_element_type=jnp.float32) + b4_ref[...]

    # (TILE_B, 1) store: lane-sparse / masked, but it rides the vector-store
    # slot underneath the MXU+VPU work, so it is not the binding resource.
    o_ref[...] = out.astype(o_ref.dtype)


def linear_regression_forward(x, params, *, tile_b=8192):
    """x: (B, input_dim) float32. params: dict of transposed weights/biases.

    tile_b: max batch-tile size. Rounded to a multiple of 128 (safe sublane/lane
    blocking for every dtype) and clipped to the (padded) batch. The default of
    8192 rows is <1 MiB of double-buffered VMEM at small input_dim, so it fits
    comfortably inside the scoped VMEM limit on v5e/v6e (128 MiB) and v7x
    (64 MiB) alike while amortizing the ~0.35 us per-grid-step overhead.
    """
    B, input_dim = x.shape

    # Batch tiling (multiple of 128 keeps blocks legal for f32 and bf16).
    tile_b = max(128, min(tile_b, _round_up(B, 128)))
    tile_b = _round_up(tile_b, 128)
    b_pad = _round_up(B, tile_b)
    if b_pad != B:
        x = jnp.pad(x, ((0, b_pad - B), (0, 0)))
    n_tiles = pl.cdiv(b_pad, tile_b)

    # bf16 stream for x / weights (mem-bound kernel); biases stay f32 since the
    # accumulator is f32 anyway.
    x_bf = x.astype(jnp.bfloat16)
    w = [params[f"w{i}"].astype(jnp.bfloat16) for i in (1, 2, 3, 4)]
    b = [params[f"b{i}"].astype(jnp.float32) for i in (1, 2, 3, 4)]

    x_spec = pl.BlockSpec((tile_b, input_dim), lambda i: (i, 0))
    out_spec = pl.BlockSpec((tile_b, 1), lambda i: (i, 0))
    # Constant index_map -> same block every grid step -> stays VMEM-resident.
    resident = lambda arr: pl.BlockSpec(arr.shape, lambda i: (0, 0))

    out = pl.pallas_call(
        mlp_kernel,
        out_shape=jax.ShapeDtypeStruct((b_pad, 1), jnp.float32),
        grid=(n_tiles,),
        in_specs=[
            x_spec,
            resident(w[0]), resident(b[0]),
            resident(w[1]), resident(b[1]),
            resident(w[2]), resident(b[2]),
            resident(w[3]), resident(b[3]),
        ],
        out_specs=out_spec,
        compiler_params=pltpu.CompilerParams(
            # Batch tiles are independent -> shard across both TCs on v7x.
            dimension_semantics=("parallel",)),
    )(x_bf, w[0], b[0], w[1], b[1], w[2], b[2], w[3], b[3])

    return out[:B]


def init_params(key, input_dim):
    """Deterministic init mirroring nn.Linear shapes.

    PyTorch stores weight as (out, in); we keep them transposed (in, out)
    so the kernel computes x @ W + b. Master params are kept in f32."""
    dims = [(input_dim, 10), (10, 5), (5, 3), (3, 1)]
    params = {}
    for i, (fan_in, fan_out) in enumerate(dims, start=1):
        key, kw, kb = jax.random.split(key, 3)
        bound = 1.0 / (fan_in ** 0.5)
        params[f"w{i}"] = jax.random.uniform(
            kw, (fan_in, fan_out), jnp.float32, -bound, bound)
        params[f"b{i}"] = jax.random.uniform(
            kb, (1, fan_out), jnp.float32, -bound, bound)
    return params


def reference_forward(x, params):
    """Pure-JAX reference mirroring the kernel's bf16-stream / f32-acc math."""
    w = [params[f"w{i}"].astype(jnp.bfloat16) for i in (1, 2, 3, 4)]
    b = [params[f"b{i}"].astype(jnp.float32) for i in (1, 2, 3, 4)]
    h = x.astype(jnp.bfloat16)
    for i in range(3):
        h = jnp.dot(h, w[i], preferred_element_type=jnp.float32) + b[i]
        h = jnp.maximum(h, 0.0).astype(jnp.bfloat16)
    return jnp.dot(h, w[3], preferred_element_type=jnp.float32) + b[3]


if __name__ == "__main__":
    key = jax.random.PRNGKey(0)
    # Small tabular-style shapes; batch deliberately not a multiple of the tile
    # so the padding/ragged-tail path is exercised.
    batch, input_dim = 200, 13

    key, kx = jax.random.split(key)
    x = jax.random.normal(kx, (batch, input_dim), dtype=jnp.float32)
    params = init_params(key, input_dim)

    # Small tile in the demo so the grid actually has >1 step; production
    # callers keep the default tile_b=8192.
    out = linear_regression_forward(x, params, tile_b=128)
    out = jax.block_until_ready(out)

    ref = reference_forward(x, params)
    assert out.shape == (batch, 1), out.shape
    max_err = float(jnp.max(jnp.abs(out - ref)))
    assert jnp.allclose(out, ref, atol=1e-3, rtol=1e-3), max_err

    print("KERNEL_OK")
</pallas_src>

<mosaic_0001>
module attributes {stable_mosaic.version = 11 : i64} {
  func.func @mlp_kernel(%arg0: i32, %arg1: memref<128x13xbf16, #tpu.memory_space<vmem>>, %arg2: memref<13x10xbf16, #tpu.memory_space<vmem>>, %arg3: memref<1x10xf32, #tpu.memory_space<vmem>>, %arg4: memref<10x5xbf16, #tpu.memory_space<vmem>>, %arg5: memref<1x5xf32, #tpu.memory_space<vmem>>, %arg6: memref<5x3xbf16, #tpu.memory_space<vmem>>, %arg7: memref<1x3xf32, #tpu.memory_space<vmem>>, %arg8: memref<3x1xbf16, #tpu.memory_space<vmem>>, %arg9: memref<1x1xf32, #tpu.memory_space<vmem>>, %arg10: memref<128x1xf32, #tpu.memory_space<vmem>>) attributes {dimension_semantics = [#tpu.dimension_semantics<parallel>], iteration_bounds = array<i64: 2>, scalar_prefetch = 0 : i64, scratch_operands = 0 : i64, tpu.core_type = #tpu.core_type<tc>, window_params = [{transform_indices = @transform_0, window_bounds = array<i64: 128, 13>}, {pipeline_mode = #tpu.pipeline_mode<synchronous>, transform_indices = @transform_1, window_bounds = array<i64: 13, 10>}, {pipeline_mode = #tpu.pipeline_mode<synchronous>, transform_indices = @transform_2, window_bounds = array<i64: 1, 10>}, {pipeline_mode = #tpu.pipeline_mode<synchronous>, transform_indices = @transform_3, window_bounds = array<i64: 10, 5>}, {pipeline_mode = #tpu.pipeline_mode<synchronous>, transform_indices = @transform_4, window_bounds = array<i64: 1, 5>}, {pipeline_mode = #tpu.pipeline_mode<synchronous>, transform_indices = @transform_5, window_bounds = array<i64: 5, 3>}, {pipeline_mode = #tpu.pipeline_mode<synchronous>, transform_indices = @transform_6, window_bounds = array<i64: 1, 3>}, {pipeline_mode = #tpu.pipeline_mode<synchronous>, transform_indices = @transform_7, window_bounds = array<i64: 3, 1>}, {pipeline_mode = #tpu.pipeline_mode<synchronous>, transform_indices = @transform_8, window_bounds = array<i64: 1, 1>}, {transform_indices = @transform_9, window_bounds = array<i64: 128, 1>}]} {
    %c0 = arith.constant 0 : index
    %c0_0 = arith.constant 0 : index
    %0 = vector.load %arg1[%c0, %c0_0] : memref<128x13xbf16, #tpu.memory_space<vmem>>, vector<128x13xbf16>
    %c0_1 = arith.constant 0 : index
    %c0_2 = arith.constant 0 : index
    %1 = vector.load %arg2[%c0_1, %c0_2] : memref<13x10xbf16, #tpu.memory_space<vmem>>, vector<13x10xbf16>
    %cst = arith.constant dense<0.000000e+00> : vector<128x10xf32>
    %2 = tpu.matmul %0, %1, %cst {dimension_numbers = #tpu.dot_dimension_numbers<[1], [0], [0], [1], [0, 0, 1, 1], [], []>} : vector<128x13xbf16>, vector<13x10xbf16>, vector<128x10xf32> -> vector<128x10xf32>
    %c0_3 = arith.constant 0 : index
    %c0_4 = arith.constant 0 : index
    %3 = vector.load %arg3[%c0_3, %c0_4] : memref<1x10xf32, #tpu.memory_space<vmem>>, vector<1x10xf32>
    %4 = vector.broadcast %3 : vector<1x10xf32> to vector<128x10xf32>
    %5 = arith.addf %2, %4 : vector<128x10xf32>
    %cst_5 = arith.constant 0.000000e+00 : f32
    %6 = vector.broadcast %cst_5 : f32 to vector<128x10xf32>
    %7 = arith.maximumf %5, %6 : vector<128x10xf32>
    %8 = arith.truncf %7 : vector<128x10xf32> to vector<128x10xbf16>
    %c0_6 = arith.constant 0 : index
    %c0_7 = arith.constant 0 : index
    %9 = vector.load %arg4[%c0_6, %c0_7] : memref<10x5xbf16, #tpu.memory_space<vmem>>, vector<10x5xbf16>
    %cst_8 = arith.constant dense<0.000000e+00> : vector<128x5xf32>
    %10 = tpu.matmul %8, %9, %cst_8 {dimension_numbers = #tpu.dot_dimension_numbers<[1], [0], [0], [1], [0, 0, 1, 1], [], []>} : vector<128x10xbf16>, vector<10x5xbf16>, vector<128x5xf32> -> vector<128x5xf32>
    %c0_9 = arith.constant 0 : index
    %c0_10 = arith.constant 0 : index
    %11 = vector.load %arg5[%c0_9, %c0_10] : memref<1x5xf32, #tpu.memory_space<vmem>>, vector<1x5xf32>
    %12 = vector.broadcast %11 : vector<1x5xf32> to vector<128x5xf32>
    %13 = arith.addf %10, %12 : vector<128x5xf32>
    %cst_11 = arith.constant 0.000000e+00 : f32
    %14 = vector.broadcast %cst_11 : f32 to vector<128x5xf32>
    %15 = arith.maximumf %13, %14 : vector<128x5xf32>
    %16 = arith.truncf %15 : vector<128x5xf32> to vector<128x5xbf16>
    %c0_12 = arith.constant 0 : index
    %c0_13 = arith.constant 0 : index
    %17 = vector.load %arg6[%c0_12, %c0_13] : memref<5x3xbf16, #tpu.memory_space<vmem>>, vector<5x3xbf16>
    %cst_14 = arith.constant dense<0.000000e+00> : vector<128x3xf32>
    %18 = tpu.matmul %16, %17, %cst_14 {dimension_numbers = #tpu.dot_dimension_numbers<[1], [0], [0], [1], [0, 0, 1, 1], [], []>} : vector<128x5xbf16>, vector<5x3xbf16>, vector<128x3xf32> -> vector<128x3xf32>
    %c0_15 = arith.constant 0 : index
    %c0_16 = arith.constant 0 : index
    %19 = vector.load %arg7[%c0_15, %c0_16] : memref<1x3xf32, #tpu.memory_space<vmem>>, vector<1x3xf32>
    %20 = vector.broadcast %19 : vector<1x3xf32> to vector<128x3xf32>
    %21 = arith.addf %18, %20 : vector<128x3xf32>
    %cst_17 = arith.constant 0.000000e+00 : f32
    %22 = vector.broadcast %cst_17 : f32 to vector<128x3xf32>
    %23 = arith.maximumf %21, %22 : vector<128x3xf32>
    %24 = arith.truncf %23 : vector<128x3xf32> to vector<128x3xbf16>
    %c0_18 = arith.constant 0 : index
    %c0_19 = arith.constant 0 : index
    %25 = vector.load %arg8[%c0_18, %c0_19] : memref<3x1xbf16, #tpu.memory_space<vmem>>, vector<3x1xbf16>
    %cst_20 = arith.constant dense<0.000000e+00> : vector<128x1xf32>
    %26 = tpu.matmul %24, %25, %cst_20 {dimension_numbers = #tpu.dot_dimension_numbers<[1], [0], [0], [1], [0, 0, 1, 1], [], []>} : vector<128x3xbf16>, vector<3x1xbf16>, vector<128x1xf32> -> vector<128x1xf32>
    %c0_21 = arith.constant 0 : index
    %c0_22 = arith.constant 0 : index
    %27 = vector.load %arg9[%c0_21, %c0_22] : memref<1x1xf32, #tpu.memory_space<vmem>>, vector<1x1xf32>
    %28 = vector.broadcast %27 : vector<1x1xf32> to vector<128x1xf32>
    %29 = arith.addf %26, %28 : vector<128x1xf32>
    %c0_23 = arith.constant 0 : index
    %c0_24 = arith.constant 0 : index
    %30 = vector.load %arg10[%c0_23, %c0_24] : memref<128x1xf32, #tpu.memory_space<vmem>>, vector<128x1xf32>
    tpu.vector_store %arg10[%c0_23, %c0_24], %29 {strides = array<i32>} : memref<128x1xf32, #tpu.memory_space<vmem>>, vector<128x1xf32>,
    return
  }
  func.func @transform_0(%arg0: i32) -> (i32, i32) {
    %c0_i32 = arith.constant 0 : i32
    %c0_i32_0 = arith.constant 0 : i32
    return %arg0, %c0_i32 : i32, i32
  }
  func.func @transform_1(%arg0: i32) -> (i32, i32) {
    %c0_i32 = arith.constant 0 : i32
    %c0_i32_0 = arith.constant 0 : i32
    %c0_i32_1 = arith.constant 0 : i32
    return %c0_i32, %c0_i32_0 : i32, i32
  }
  func.func @transform_2(%arg0: i32) -> (i32, i32) {
    %c0_i32 = arith.constant 0 : i32
    %c0_i32_0 = arith.constant 0 : i32
    %c0_i32_1 = arith.constant 0 : i32
    return %c0_i32, %c0_i32_0 : i32, i32
  }
  func.func @transform_3(%arg0: i32) -> (i32, i32) {
    %c0_i32 = arith.constant 0 : i32
    %c0_i32_0 = arith.constant 0 : i32
    %c0_i32_1 = arith.constant 0 : i32
    return %c0_i32, %c0_i32_0 : i32, i32
  }
  func.func @transform_4(%arg0: i32) -> (i32, i32) {
    %c0_i32 = arith.constant 0 : i32
    %c0_i32_0 = arith.constant 0 : i32
    %c0_i32_1 = arith.constant 0 : i32
    return %c0_i32, %c0_i32_0 : i32, i32
  }
  func.func @transform_5(%arg0: i32) -> (i32, i32) {
    %c0_i32 = arith.constant 0 : i32
    %c0_i32_0 = arith.constant 0 : i32
    %c0_i32_1 = arith.constant 0 : i32
    return %c0_i32, %c0_i32_0 : i32, i32
  }
  func.func @transform_6(%arg0: i32) -> (i32, i32) {
    %c0_i32 = arith.constant 0 : i32
    %c0_i32_0 = arith.constant 0 : i32
    %c0_i32_1 = arith.constant 0 : i32
    return %c0_i32, %c0_i32_0 : i32, i32
  }
  func.func @transform_7(%arg0: i32) -> (i32, i32) {
    %c0_i32 = arith.constant 0 : i32
    %c0_i32_0 = arith.constant 0 : i32
    %c0_i32_1 = arith.constant 0 : i32
    return %c0_i32, %c0_i32_0 : i32, i32
  }
  func.func @transform_8(%arg0: i32) -> (i32, i32) {
    %c0_i32 = arith.constant 0 : i32
    %c0_i32_0 = arith.constant 0 : i32
    %c0_i32_1 = arith.constant 0 : i32
    return %c0_i32, %c0_i32_0 : i32, i32
  }
  func.func @transform_9(%arg0: i32) -> (i32, i32) {
    %c0_i32 = arith.constant 0 : i32
    %c0_i32_0 = arith.constant 0 : i32
    return %arg0, %c0_i32 : i32, i32
  }
}

</mosaic_0001>

<llo_original>
// kernel: tpu_custom_call.1
$region0: #{tpu_custom_call.1}
  #allocation0 [shape = 'u32[]', space=smem, size = 0x4, offset = 0x4, fixed_abs, tag = 'smem constant byte address 0x4 - core index']
  #allocation1 [shape = 'u32[144,128]{1,0:T(1,128)}', space=vmem, size = 0x12000, scoped, tag = 'internal scratch']
  #allocation2 [shape = 'f32[1,1]{1,0:T(1,128)S(1)}', space=vmem, size = 0x200, scoped, tag = 'scoped memory for tpu_custom_call.1']
  %s0 = inlined_call_operand.vmem [shape: bf16[256,13], index: 0, kind: input, shape index: {}]
  %s1 = inlined_call_operand.vmem [shape: bf16[13,10], index: 1, kind: input, shape index: {}]
  %s2 = inlined_call_operand.vmem [shape: f32[1,10], index: 2, kind: input, shape index: {}]
  %s3 = inlined_call_operand.vmem [shape: bf16[10,5], index: 3, kind: input, shape index: {}]
  %s4 = inlined_call_operand.vmem [shape: f32[1,5], index: 4, kind: input, shape index: {}]
  %s5 = inlined_call_operand.vmem [shape: bf16[5,3], index: 5, kind: input, shape index: {}]
  %s6 = inlined_call_operand.vmem [shape: f32[1,3], index: 6, kind: input, shape index: {}]
  %s7 = inlined_call_operand.vmem [shape: bf16[3,1], index: 7, kind: input, shape index: {}]
  %s8 = inlined_call_operand.<no memory space> [shape: f32[1,1], index: 8, kind: input, shape index: {}]
  %s9 = inlined_call_operand.vmem [shape: f32[256,1], index: 9, kind: output, shape index: {}]
  %s10 = sld [smem:[#allocation0]]
  $region69: #{tpu_custom_call.1} parent=0
    _
  %s12 = ssub.s32 1, %s10
  %s13 = scalar_select 0, %s12, %s10
  %v14 = vstv %s8
  %15 = vst [vmem:[#allocation2] sm:$0x1] %v14
  loop: start=0, step=1, limit=4
  $region2: #{tpu_custom_call.1} parent=0 // loop_pre_header
    _
  $region3: #{tpu_custom_call.1} parent=0 // loop_header
    %s17 = sphi 0, %s21
    %p18 = scmp.ge.s32.totalorder %s17, 4
    %s27 = sphi 0, %s29
    %s30 = sphi 0, %s27
    %s31 = sphi 0, %s30
    %s47 = sphi 0, %s31
    %s51 = sphi 0, %s51
    %s53 = sphi 0, %s51
    %s54 = sphi 0, %s53
    %s68 = sphi 0, %s54
    %s72 = sphi 0, %s72
    %s74 = sphi 0, %s72
    %s75 = sphi 0, %s74
    %s89 = sphi 0, %s75
    %s93 = sphi 0, %s93
    %s95 = sphi 0, %s93
    %s96 = sphi 0, %s95
    %s110 = sphi 0, %s96
    %s114 = sphi 0, %s114
    %s116 = sphi 0, %s114
    %s117 = sphi 0, %s116
    %s131 = sphi 0, %s117
    %s135 = sphi 0, %s135
    %s137 = sphi 0, %s135
    %s138 = sphi 0, %s137
    %s152 = sphi 0, %s138
    %s156 = sphi 0, %s156
    %s158 = sphi 0, %s156
    %s159 = sphi 0, %s158
    %s173 = sphi 0, %s159
    %s177 = sphi 0, %s177
    %s179 = sphi 0, %s177
    %s180 = sphi 0, %s179
    %s194 = sphi 0, %s180
    %s198 = sphi 0, %s198
    %s200 = sphi 0, %s198
    %s201 = sphi 0, %s200
    %s215 = sphi 0, %s201
    %s221 = sphi 0, %s223
    %s224 = sphi 0, %s221
    %s225 = sphi 0, %s224
    %s241 = sphi 0, %s225
  $region4: #{tpu_custom_call.1} parent=0 // loop_header_branch
    %20 = sbr.rel (%p18) target = $region8
  $region5: #{tpu_custom_call.1} parent=0 // loop_body
    %s22 = ssub.s32 %s17, 1
    %s23 = ssub.s32 %s17, 2
    %s24 = sadd.s32 %s17, 1
    %s25 = ssub.s32 %s17, %s24
    %p26 = scmp.eq.s32.totalorder %s25, 0
    %s28 = sadd.s32 %s27, 1
    %s29 = scalar_select %p26, %s27, %s28
    %p32 = pneg %p26
    %p33 = scmp.eq.s32.totalorder %s17, 1
    %p34 = por %p32, %p33
    %p35 = scmp.ne.s32.totalorder %s27, %s30
    %p36 = scmp.eq.s32.totalorder %s17, 0
    %p37 = por %p35, %p36
    %p38 = scmp.ne.s32.totalorder %s27, %s30
    %p39 = scmp.eq.s32.totalorder %s22, 1
    %p40 = por %p38, %p39
    %p41 = scmp.ne.s32.totalorder %s30, %s31
    %p42 = scmp.eq.s32.totalorder %s22, 0
    %p43 = por %p41, %p42
    %p44 = scmp.ne.s32.totalorder %s30, %s31
    %p45 = scmp.eq.s32.totalorder %s23, 1
    %p46 = por %p44, %p45
    %p48 = scmp.ne.s32.totalorder %s31, %s47
    %p49 = scmp.eq.s32.totalorder %s23, 0
    %p50 = por %p48, %p49
    %s52 = sadd.s32 %s51, 1
    %p55 = scmp.eq.s32.totalorder %s17, 1
    %p56 = scmp.ne.s32.totalorder %s51, %s53
    %p57 = scmp.eq.s32.totalorder %s17, 0
    %p58 = por %p56, %p57
    %p59 = scmp.ne.s32.totalorder %s51, %s53
    %p60 = scmp.eq.s32.totalorder %s22, 1
    %p61 = por %p59, %p60
    %p62 = scmp.ne.s32.totalorder %s53, %s54
    %p63 = scmp.eq.s32.totalorder %s22, 0
    %p64 = por %p62, %p63
    %p65 = scmp.ne.s32.totalorder %s53, %s54
    %p66 = scmp.eq.s32.totalorder %s23, 1
    %p67 = por %p65, %p66
    %p69 = scmp.ne.s32.totalorder %s54, %s68
    %p70 = scmp.eq.s32.totalorder %s23, 0
    %p71 = por %p69, %p70
    %s73 = sadd.s32 %s72, 1
    %p76 = scmp.eq.s32.totalorder %s17, 1
    %p77 = scmp.ne.s32.totalorder %s72, %s74
    %p78 = scmp.eq.s32.totalorder %s17, 0
    %p79 = por %p77, %p78
    %p80 = scmp.ne.s32.totalorder %s72, %s74
    %p81 = scmp.eq.s32.totalorder %s22, 1
    %p82 = por %p80, %p81
    %p83 = scmp.ne.s32.totalorder %s74, %s75
    %p84 = scmp.eq.s32.totalorder %s22, 0
    %p85 = por %p83, %p84
    %p86 = scmp.ne.s32.totalorder %s74, %s75
    %p87 = scmp.eq.s32.totalorder %s23, 1
    %p88 = por %p86, %p87
    %p90 = scmp.ne.s32.totalorder %s75, %s89
    %p91 = scmp.eq.s32.totalorder %s23, 0
    %p92 = por %p90, %p91
    %s94 = sadd.s32 %s93, 1
    %p97 = scmp.eq.s32.totalorder %s17, 1
    %p98 = scmp.ne.s32.totalorder %s93, %s95
    %p99 = scmp.eq.s32.totalorder %s17, 0
    %p100 = por %p98, %p99
    %p101 = scmp.ne.s32.totalorder %s93, %s95
    %p102 = scmp.eq.s32.totalorder %s22, 1
    %p103 = por %p101, %p102
    %p104 = scmp.ne.s32.totalorder %s95, %s96
    %p105 = scmp.eq.s32.totalorder %s22, 0
    %p106 = por %p104, %p105
    %p107 = scmp.ne.s32.totalorder %s95, %s96
    %p108 = scmp.eq.s32.totalorder %s23, 1
    %p109 = por %p107, %p108
    %p111 = scmp.ne.s32.totalorder %s96, %s110
    %p112 = scmp.eq.s32.totalorder %s23, 0
    %p113 = por %p111, %p112
    %s115 = sadd.s32 %s114, 1
    %p118 = scmp.eq.s32.totalorder %s17, 1
    %p119 = scmp.ne.s32.totalorder %s114, %s116
    %p120 = scmp.eq.s32.totalorder %s17, 0
    %p121 = por %p119, %p120
    %p122 = scmp.ne.s32.totalorder %s114, %s116
    %p123 = scmp.eq.s32.totalorder %s22, 1
    %p124 = por %p122, %p123
    %p125 = scmp.ne.s32.totalorder %s116, %s117
    %p126 = scmp.eq.s32.totalorder %s22, 0
    %p127 = por %p125, %p126
    %p128 = scmp.ne.s32.totalorder %s116, %s117
    %p129 = scmp.eq.s32.totalorder %s23, 1
    %p130 = por %p128, %p129
    %p132 = scmp.ne.s32.totalorder %s117, %s131
    %p133 = scmp.eq.s32.totalorder %s23, 0
    %p134 = por %p132, %p133
    %s136 = sadd.s32 %s135, 1
    %p139 = scmp.eq.s32.totalorder %s17, 1
    %p140 = scmp.ne.s32.totalorder %s135, %s137
    %p141 = scmp.eq.s32.totalorder %s17, 0
    %p142 = por %p140, %p141
    %p143 = scmp.ne.s32.totalorder %s135, %s137
    %p144 = scmp.eq.s32.totalorder %s22, 1
    %p145 = por %p143, %p144
    %p146 = scmp.ne.s32.totalorder %s137, %s138
    %p147 = scmp.eq.s32.totalorder %s22, 0
    %p148 = por %p146, %p147
    %p149 = scmp.ne.s32.totalorder %s137, %s138
    %p150 = scmp.eq.s32.totalorder %s23, 1
    %p151 = por %p149, %p150
    %p153 = scmp.ne.s32.totalorder %s138, %s152
    %p154 = scmp.eq.s32.totalorder %s23, 0
    %p155 = por %p153, %p154
    %s157 = sadd.s32 %s156, 1
    %p160 = scmp.eq.s32.totalorder %s17, 1
    %p161 = scmp.ne.s32.totalorder %s156, %s158
    %p162 = scmp.eq.s32.totalorder %s17, 0
    %p163 = por %p161, %p162
    %p164 = scmp.ne.s32.totalorder %s156, %s158
    %p165 = scmp.eq.s32.totalorder %s22, 1
    %p166 = por %p164, %p165
    %p167 = scmp.ne.s32.totalorder %s158, %s159
    %p168 = scmp.eq.s32.totalorder %s22, 0
    %p169 = por %p167, %p168
    %p170 = scmp.ne.s32.totalorder %s158, %s159
    %p171 = scmp.eq.s32.totalorder %s23, 1
    %p172 = por %p170, %p171
    %p174 = scmp.ne.s32.totalorder %s159, %s173
    %p175 = scmp.eq.s32.totalorder %s23, 0
    %p176 = por %p174, %p175
    %s178 = sadd.s32 %s177, 1
    %p181 = scmp.eq.s32.totalorder %s17, 1
    %p182 = scmp.ne.s32.totalorder %s177, %s179
    %p183 = scmp.eq.s32.totalorder %s17, 0
    %p184 = por %p182, %p183
    %p185 = scmp.ne.s32.totalorder %s177, %s179
    %p186 = scmp.eq.s32.totalorder %s22, 1
    %p187 = por %p185, %p186
    %p188 = scmp.ne.s32.totalorder %s179, %s180
    %p189 = scmp.eq.s32.totalorder %s22, 0
    %p190 = por %p188, %p189
    %p191 = scmp.ne.s32.totalorder %s179, %s180
    %p192 = scmp.eq.s32.totalorder %s23, 1
    %p193 = por %p191, %p192
    %p195 = scmp.ne.s32.totalorder %s180, %s194
    %p196 = scmp.eq.s32.totalorder %s23, 0
    %p197 = por %p195, %p196
    %s199 = sadd.s32 %s198, 1
    %p202 = scmp.eq.s32.totalorder %s17, 1
    %p203 = scmp.ne.s32.totalorder %s198, %s200
    %p204 = scmp.eq.s32.totalorder %s17, 0
    %p205 = por %p203, %p204
    %p206 = scmp.ne.s32.totalorder %s198, %s200
    %p207 = scmp.eq.s32.totalorder %s22, 1
    %p208 = por %p206, %p207
    %p209 = scmp.ne.s32.totalorder %s200, %s201
    %p210 = scmp.eq.s32.totalorder %s22, 0
    %p211 = por %p209, %p210
    %p212 = scmp.ne.s32.totalorder %s200, %s201
    %p213 = scmp.eq.s32.totalorder %s23, 1
    %p214 = por %p212, %p213
    %p216 = scmp.ne.s32.totalorder %s201, %s215
    %p217 = scmp.eq.s32.totalorder %s23, 0
    %p218 = por %p216, %p217
    %s219 = ssub.s32 %s17, %s24
    %p220 = scmp.eq.s32.totalorder %s219, 0
    %s222 = sadd.s32 %s221, 1
    %s223 = scalar_select %p220, %s221, %s222
    %p226 = pneg %p220
    %p227 = scmp.eq.s32.totalorder %s17, 1
    %p228 = por %p226, %p227
    %p229 = scmp.ne.s32.totalorder %s221, %s224
    %p230 = scmp.eq.s32.totalorder %s17, 0
    %p231 = por %p229, %p230
    %p232 = scmp.ne.s32.totalorder %s221, %s224
    %p233 = scmp.eq.s32.totalorder %s22, 1
    %p234 = por %p232, %p233
    %p235 = scmp.ne.s32.totalorder %s224, %s225
    %p236 = scmp.eq.s32.totalorder %s22, 0
    %p237 = por %p235, %p236
    %p238 = scmp.ne.s32.totalorder %s224, %s225
    %p239 = scmp.eq.s32.totalorder %s23, 1
    %p240 = por %p238, %p239
    %p242 = scmp.ne.s32.totalorder %s225, %s241
    %p243 = scmp.eq.s32.totalorder %s23, 0
    %p244 = por %p242, %p243
    %p245 = scmp.le.s32.totalorder 1, %s17
    %p246 = scmp.lt.s32.totalorder %s17, 3
    %p247 = pnand %p245, %p246
    %p248 = pneg %p247
    // Predicated region
    $region9: #{tpu_custom_call.1} parent=5 // pred_check
      _
    $region10: #{tpu_custom_call.1} parent=5 // pred_check_branch
      %250 = sbr.rel (%p247) target = $region12
    $region11: #{tpu_custom_call.1} parent=5 // pred_region
      %s251 = ssub.s32 %s17, 1
      // Predicated region
      $region13: #{tpu_custom_call.1} parent=11 // pred_check
        %p252 = pneg %p64
      $region14: #{tpu_custom_call.1} parent=11 // pred_check_branch
        %254 = sbr.rel (%p252) target = $region16
      $region15: #{tpu_custom_call.1} parent=11 // pred_region
        _
      $region16: #{tpu_custom_call.1} parent=11 // pred_fallthru
        _
      // Predicated region
      $region17: #{tpu_custom_call.1} parent=11 // pred_check
        %p255 = pneg %p85
      $region18: #{tpu_custom_call.1} parent=11 // pred_check_branch
        %257 = sbr.rel (%p255) target = $region20
      $region19: #{tpu_custom_call.1} parent=11 // pred_region
        _
      $region20: #{tpu_custom_call.1} parent=11 // pred_fallthru
        _
      // Predicated region
      $region21: #{tpu_custom_call.1} parent=11 // pred_check
        %p258 = pneg %p106
      $region22: #{tpu_custom_call.1} parent=11 // pred_check_branch
        %260 = sbr.rel (%p258) target = $region24
      $region23: #{tpu_custom_call.1} parent=11 // pred_region
        _
      $region24: #{tpu_custom_call.1} parent=11 // pred_fallthru
        _
      // Predicated region
      $region25: #{tpu_custom_call.1} parent=11 // pred_check
        %p261 = pneg %p127
      $region26: #{tpu_custom_call.1} parent=11 // pred_check_branch
        %263 = sbr.rel (%p261) target = $region28
      $region27: #{tpu_custom_call.1} parent=11 // pred_region
        _
      $region28: #{tpu_custom_call.1} parent=11 // pred_fallthru
        _
      // Predicated region
      $region29: #{tpu_custom_call.1} parent=11 // pred_check
        %p264 = pneg %p148
      $region30: #{tpu_custom_call.1} parent=11 // pred_check_branch
        %266 = sbr.rel (%p264) target = $region32
      $region31: #{tpu_custom_call.1} parent=11 // pred_region
        _
      $region32: #{tpu_custom_call.1} parent=11 // pred_fallthru
        _
      // Predicated region
      $region33: #{tpu_custom_call.1} parent=11 // pred_check
        %p267 = pneg %p169
      $region34: #{tpu_custom_call.1} parent=11 // pred_check_branch
        %269 = sbr.rel (%p267) target = $region36
      $region35: #{tpu_custom_call.1} parent=11 // pred_region
        _
      $region36: #{tpu_custom_call.1} parent=11 // pred_fallthru
        _
      // Predicated region
      $region37: #{tpu_custom_call.1} parent=11 // pred_check
        %p270 = pneg %p190
      $region38: #{tpu_custom_call.1} parent=11 // pred_check_branch
        %272 = sbr.rel (%p270) target = $region40
      $region39: #{tpu_custom_call.1} parent=11 // pred_region
        _
      $region40: #{tpu_custom_call.1} parent=11 // pred_fallthru
        _
      // Predicated region
      $region41: #{tpu_custom_call.1} parent=11 // pred_check
        %p273 = pneg %p211
      $region42: #{tpu_custom_call.1} parent=11 // pred_check_branch
        %275 = sbr.rel (%p273) target = $region44
      $region43: #{tpu_custom_call.1} parent=11 // pred_region
        _
      $region44: #{tpu_custom_call.1} parent=11 // pred_fallthru
        _
    $region12: #{tpu_custom_call.1} parent=5 // pred_fallthru
      _
    %p276 = scmp.lt.s32.totalorder %s17, 2
    // Predicated region
    $region45: #{tpu_custom_call.1} parent=5 // pred_check
      %p277 = pneg %p276
    $region46: #{tpu_custom_call.1} parent=5 // pred_check_branch
      %279 = sbr.rel (%p277) target = $region48
    $region47: #{tpu_custom_call.1} parent=5 // pred_region
      // Predicated region
      $region49: #{tpu_custom_call.1} parent=47 // pred_check
        %p280 = pneg %p37
      $region50: #{tpu_custom_call.1} parent=47 // pred_check_branch
        %282 = sbr.rel (%p280) target = $region52
      $region51: #{tpu_custom_call.1} parent=47 // pred_region
        %s283 = smul.u32 16, %s17
        %p284 = scmp.lt.s32.totalorder %s283, 31
        %s285 = scalar_select %p284, %s283, 31
        %s286 = smul.addr %s285, 4
        %s287 = scalar_lea.vmem %s0, %s286
        %s288 = smul.u32 16, %s17
      $region52: #{tpu_custom_call.1} parent=47 // pred_fallthru
        _
    $region48: #{tpu_custom_call.1} parent=5 // pred_fallthru
      _
    %p289 = scmp.le.s32.totalorder 1, %s17
    %p290 = scmp.lt.s32.totalorder %s17, 3
    %p291 = pnand %p289, %p290
    %p292 = pneg %p291
    // Predicated region
    $region53: #{tpu_custom_call.1} parent=5 // pred_check
      _
    $region54: #{tpu_custom_call.1} parent=5 // pred_check_branch
      %294 = sbr.rel (%p291) target = $region56
    $region55: #{tpu_custom_call.1} parent=5 // pred_region
      %s295 = ssub.s32 %s17, 1
      %s296 = smul.u32 16, %s22
      %p297 = scmp.lt.s32.totalorder %s296, 31
      %s298 = scalar_select %p297, %s296, 31
      %s299 = smul.addr %s298, 4
      %s300 = scalar_lea.vmem %s0, %s299
      %p301 = pneg %p43
      %p302 = pneg %p40
      %p303 = pneg %p64
      %p304 = pneg %p61
      %p305 = pneg %p85
      %p306 = pneg %p82
      %p307 = pneg %p106
      %p308 = pneg %p103
      %p309 = pneg %p127
      %p310 = pneg %p124
      %p311 = pneg %p148
      %p312 = pneg %p145
      %p313 = pneg %p169
      %p314 = pneg %p166
      %p315 = pneg %p190
      %p316 = pneg %p187
      %p317 = pneg %p211
      %p318 = pneg %p208
      %p319 = pneg %p237
      %p320 = pneg %p234
      %s321 = smul.u32 16, %s22
      %p322 = scmp.lt.s32.totalorder %s321, 31
      %s323 = scalar_select %p322, %s321, 31
      %s324 = smul.addr %s323, 8
      %s325 = scalar_lea.vmem %s9, %s324
      %s326 = smul.u32 16, %s22
      %p327 = scmp.lt.s32.totalorder %s326, 31
      %s328 = scalar_select %p327, %s326, 31
      %s329 = smul.addr %s328, 4
      %s330 = scalar_lea.vmem %s0, %s329
      %s331 = smul.u32 16, %s22
      %s332 = smul.u32 16, %s22
      %p333 = scmp.lt.s32.totalorder %s332, 31
      %s334 = scalar_select %p333, %s332, 31
      %s335 = smul.addr %s334, 8
      %s336 = scalar_lea.vmem %s9, %s335
      %s337 = smul.u32 16, %s22
      %v339 = vld [vmem:[%s330] sm:$0xf]
      %v340 = vld [vmem:[%s330 + $0x4] sm:$0xf]
      %v341 = vld [vmem:[%s330 + $0x8] sm:$0xf]
      %v342 = vld [vmem:[%s330 + $0xc] sm:$0xf]
      %v343 = vld [vmem:[%s330 + $0x10] sm:$0xf]
      %v344 = vld [vmem:[%s330 + $0x14] sm:$0xf]
      %v345 = vld [vmem:[%s330 + $0x18] sm:$0xf]
      %v346 = vld [vmem:[%s330 + $0x1c] sm:$0xf]
      %v347 = vld [vmem:[%s330 + $0x20] sm:$0xf]
      %v348 = vld [vmem:[%s330 + $0x24] sm:$0xf]
      %v349 = vld [vmem:[%s330 + $0x28] sm:$0xf]
      %v350 = vld [vmem:[%s330 + $0x2c] sm:$0xf]
      %v351 = vld [vmem:[%s330 + $0x30] sm:$0xf]
      %v352 = vld [vmem:[%s330 + $0x34] sm:$0xf]
      %v353 = vld [vmem:[%s330 + $0x38] sm:$0xf]
      %v354 = vld [vmem:[%s330 + $0x3c] sm:$0xf]
      %v355 = vld [vmem:[%s1] sm:$0xf]
      %v356 = vld [vmem:[%s1 + $0x4] sm:$0x7]
      %v357 = vld [vmem:[%s2] sm:$0x1]
      %v359 = vlaneseq
      %v360 = vshrl.u32 %v359, 7
      %v361 = vsub.s32 0, %v360
      %v362 = vrot.slane %v357, %v361
      %v380 = vunpack.c.l.b16 %v339
      %v381 = vunpack.c.l.b16 %v340
      %v382 = vunpack.c.l.b16 %v341
      %v383 = vunpack.c.l.b16 %v342
      %v384 = vunpack.c.l.b16 %v343
      %v385 = vunpack.c.l.b16 %v344
      %v386 = vunpack.c.l.b16 %v345
      %v387 = vunpack.c.l.b16 %v346
      %v388 = vunpack.c.l.b16 %v347
      %v389 = vunpack.c.l.b16 %v348
      %v390 = vunpack.c.l.b16 %v349
      %v391 = vunpack.c.l.b16 %v350
      %v392 = vunpack.c.l.b16 %v351
      %v393 = vunpack.c.l.b16 %v352
      %v394 = vunpack.c.l.b16 %v353
      %v395 = vunpack.c.l.b16 %v354
      %v396 = vpack.c.b16 %v381, %v380
      %v397 = vpack.c.b16 %v383, %v382
      %v398 = vpack.c.b16 %v385, %v384
      %v399 = vpack.c.b16 %v387, %v386
      %v400 = vpack.c.b16 %v389, %v388
      %v401 = vpack.c.b16 %v391, %v390
      %v402 = vpack.c.b16 %v393, %v392
      %v403 = vpack.c.b16 %v395, %v394
      %v406 = vunpack.c.l.b16 %v355
      %v407 = vunpack.c.l.b16 %v356
      %v408 = vpack.c.b16 %v407, %v406
      %vm409 = vcmask 105472
      %v411 = vsel %vm409, %v396, 0
      %v414 = vsel %vm409, %v397, 0
      %v417 = vsel %vm409, %v398, 0
      %v420 = vsel %vm409, %v399, 0
      %v423 = vsel %vm409, %v400, 0
      %v426 = vsel %vm409, %v401, 0
      %v429 = vsel %vm409, %v402, 0
      %v432 = vsel %vm409, %v403, 0
      %vm434 = vcmask 1045504
      %vm435 = vcmask 1046528
      %v436 = vsel %vm434, 4294967295, 65535
      %v437 = vsel %vm435, %v436, 0
      %v439 = vand.u32 %v408, %v437
      %441 = vmatprep.subr.bf16.mxu0 0
      %442 = vmatpush1.bf16.msra.mxu0 %v439
      %443 = vmatprep.subr.bf16.mxu0 0
      %444 = vmatpush1.bf16.msra.mxu0 0
      %445 = vmatprep.subr.bf16.mxu0 0
      %446 = vmatpush1.bf16.msra.mxu0 0
      %447 = vmatprep.subr.bf16.mxu0 0
      %448 = vmatpush1.bf16.msra.mxu0 0
      %449 = vmatprep.subr.bf16.mxu0 0
      %450 = vmatpush1.bf16.msra.mxu0 0
      %451 = vmatprep.subr.bf16.mxu0 0
      %452 = vmatpush1.bf16.msra.mxu0 0
      %453 = vmatprep.subr.bf16.mxu0 0
      %454 = vmatpush1.bf16.msra.mxu0 0
      %455 = vmatprep.subr.bf16.mxu0 0
      %456 = vmatpush1.bf16.msra.mxu0 0
      %457 = vmatprep.subr.bf16.mxu0 0
      %458 = vmatpush1.bf16.msra.mxu0 0
      %459 = vmatprep.subr.bf16.mxu0 0
      %460 = vmatpush1.bf16.msra.mxu0 0
      %461 = vmatprep.subr.bf16.mxu0 0
      %462 = vmatpush1.bf16.msra.mxu0 0
      %463 = vmatprep.subr.bf16.mxu0 0
      %464 = vmatpush1.bf16.msra.mxu0 0
      %465 = vmatprep.subr.bf16.mxu0 0
      %466 = vmatpush1.bf16.msra.mxu0 0
      %467 = vmatprep.subr.bf16.mxu0 0
      %468 = vmatpush1.bf16.msra.mxu0 0
      %469 = vmatprep.subr.bf16.mxu0 0
      %470 = vmatpush1.bf16.msra.mxu0 0
      %471 = vmatprep.subr.bf16.mxu0 0
      %472 = vmatpush1.bf16.msra.mxu0 0
      %473 = vmatprep.mubr.bf16.mxu0 0
      %474 = vmatmul.mubr.bf16.gmra.mrb[0].mxu0 %v411
      %v475 = vpop.f32.mrb[0].mxu0
      %v476 = vadd.f32 %v362, %v475
      %v477 = vpop.f32.mrb[0].mxu0
      %v478 = vpop.f32.mrb[0].mxu0
      %v479 = vadd.f32 %v362, %v478
      %v480 = vpop.f32.mrb[0].mxu0
      %481 = vmatprep.mubr.bf16.mxu0 0
      %482 = vmatmul.mubr.bf16.gmra.mrb[0].mxu0 %v414
      %v483 = vpop.f32.mrb[0].mxu0
      %v484 = vadd.f32 %v362, %v483
      %v485 = vpop.f32.mrb[0].mxu0
      %v486 = vpop.f32.mrb[0].mxu0
      %v487 = vadd.f32 %v362, %v486
      %v488 = vpop.f32.mrb[0].mxu0
      %489 = vmatprep.mubr.bf16.mxu0 0
      %490 = vmatmul.mubr.bf16.gmra.mrb[0].mxu0 %v417
      %v491 = vpop.f32.mrb[0].mxu0
      %v492 = vadd.f32 %v362, %v491
      %v493 = vpop.f32.mrb[0].mxu0
      %v494 = vpop.f32.mrb[0].mxu0
      %v495 = vadd.f32 %v362, %v494
      %v496 = vpop.f32.mrb[0].mxu0
      %497 = vmatprep.mubr.bf16.mxu0 0
      %498 = vmatmul.mubr.bf16.gmra.mrb[0].mxu0 %v420
      %v499 = vpop.f32.mrb[0].mxu0
      %v500 = vadd.f32 %v362, %v499
      %v501 = vpop.f32.mrb[0].mxu0
      %v502 = vpop.f32.mrb[0].mxu0
      %v503 = vadd.f32 %v362, %v502
      %v504 = vpop.f32.mrb[0].mxu0
      %505 = vmatprep.mubr.bf16.mxu0 0
      %506 = vmatmul.mubr.bf16.gmra.mrb[0].mxu0 %v423
      %v507 = vpop.f32.mrb[0].mxu0
      %v508 = vadd.f32 %v362, %v507
      %v509 = vpop.f32.mrb[0].mxu0
      %v510 = vpop.f32.mrb[0].mxu0
      %v511 = vadd.f32 %v362, %v510
      %v512 = vpop.f32.mrb[0].mxu0
      %513 = vmatprep.mubr.bf16.mxu0 0
      %514 = vmatmul.mubr.bf16.gmra.mrb[0].mxu0 %v426
      %v515 = vpop.f32.mrb[0].mxu0
      %v516 = vadd.f32 %v362, %v515
      %v517 = vpop.f32.mrb[0].mxu0
      %v518 = vpop.f32.mrb[0].mxu0
      %v519 = vadd.f32 %v362, %v518
      %v520 = vpop.f32.mrb[0].mxu0
      %521 = vmatprep.mubr.bf16.mxu0 0
      %522 = vmatmul.mubr.bf16.gmra.mrb[0].mxu0 %v429
      %v523 = vpop.f32.mrb[0].mxu0
      %v524 = vadd.f32 %v362, %v523
      %v525 = vpop.f32.mrb[0].mxu0
      %v526 = vpop.f32.mrb[0].mxu0
      %v527 = vadd.f32 %v362, %v526
      %v528 = vpop.f32.mrb[0].mxu0
      %529 = vmatprep.mubr.bf16.mxu0 0
      %530 = vmatmul.mubr.bf16.gmra.mrb[0].mxu0 %v432
      %v531 = vpop.f32.mrb[0].mxu0
      %v532 = vadd.f32 %v362, %v531
      %v533 = vpop.f32.mrb[0].mxu0
      %v534 = vpop.f32.mrb[0].mxu0
      %v535 = vadd.f32 %v362, %v534
      %v536 = vpop.f32.mrb[0].mxu0
      %537 = vdwg.mxu0
      %v538 = vmax.f32 %v476, 0.0
      %v539 = vmax.f32 %v479, 0.0
      %v540 = vmax.f32 %v484, 0.0
      %v541 = vmax.f32 %v487, 0.0
      %v542 = vmax.f32 %v492, 0.0
      %v543 = vmax.f32 %v495, 0.0
      %v544 = vmax.f32 %v500, 0.0
      %v545 = vmax.f32 %v503, 0.0
      %v546 = vmax.f32 %v508, 0.0
      %v547 = vmax.f32 %v511, 0.0
      %v548 = vmax.f32 %v516, 0.0
      %v549 = vmax.f32 %v519, 0.0
      %v550 = vmax.f32 %v524, 0.0
      %v551 = vmax.f32 %v527, 0.0
      %v552 = vmax.f32 %v532, 0.0
      %v553 = vmax.f32 %v535, 0.0
      %v554 = vpack.c.bf16 %v539, %v538
      %v555 = vpack.c.bf16 %v541, %v540
      %v556 = vpack.c.bf16 %v543, %v542
      %v557 = vpack.c.bf16 %v545, %v544
      %v558 = vpack.c.bf16 %v547, %v546
      %v559 = vpack.c.bf16 %v549, %v548
      %v560 = vpack.c.bf16 %v551, %v550
      %v561 = vpack.c.bf16 %v553, %v552
      %v562 = vld [vmem:[%s3] sm:$0xf]
      %v563 = vld [vmem:[%s3 + $0x4] sm:$0x1]
      %v564 = vld [vmem:[%s4] sm:$0x1]
      %v566 = vlaneseq
      %v567 = vshrl.u32 %v566, 7
      %v568 = vsub.s32 0, %v567
      %v569 = vrot.slane %v564, %v568
      %v573 = vunpack.c.l.b16 %v562
      %v574 = vunpack.c.l.b16 %v563
      %v575 = vpack.c.b16 %v574, %v573
      %vm576 = vcmask 80896
      %v578 = vsel %vm576, %v554, 0
      %v581 = vsel %vm576, %v555, 0
      %v584 = vsel %vm576, %v556, 0
      %v587 = vsel %vm576, %v557, 0
      %v590 = vsel %vm576, %v558, 0
      %v593 = vsel %vm576, %v559, 0
      %v596 = vsel %vm576, %v560, 0
      %v599 = vsel %vm576, %v561, 0
      %vm601 = vcmask 1044480
      %v603 = vsel %vm601, %v575, 0
      %605 = vmatprep.subr.bf16.mxu0 0
      %606 = vmatpush1.bf16.msra.mxu0 %v603
      %607 = vmatprep.subr.bf16.mxu0 0
      %608 = vmatpush1.bf16.msra.mxu0 0
      %609 = vmatprep.subr.bf16.mxu0 0
      %610 = vmatpush1.bf16.msra.mxu0 0
      %611 = vmatprep.subr.bf16.mxu0 0
      %612 = vmatpush1.bf16.msra.mxu0 0
      %613 = vmatprep.subr.bf16.mxu0 0
      %614 = vmatpush1.bf16.msra.mxu0 0
      %615 = vmatprep.subr.bf16.mxu0 0
      %616 = vmatpush1.bf16.msra.mxu0 0
      %617 = vmatprep.subr.bf16.mxu0 0
      %618 = vmatpush1.bf16.msra.mxu0 0
      %619 = vmatprep.subr.bf16.mxu0 0
      %620 = vmatpush1.bf16.msra.mxu0 0
      %621 = vmatprep.subr.bf16.mxu0 0
      %622 = vmatpush1.bf16.msra.mxu0 0
      %623 = vmatprep.subr.bf16.mxu0 0
      %624 = vmatpush1.bf16.msra.mxu0 0
      %625 = vmatprep.subr.bf16.mxu0 0
      %626 = vmatpush1.bf16.msra.mxu0 0
      %627 = vmatprep.subr.bf16.mxu0 0
      %628 = vmatpush1.bf16.msra.mxu0 0
      %629 = vmatprep.subr.bf16.mxu0 0
      %630 = vmatpush1.bf16.msra.mxu0 0
      %631 = vmatprep.subr.bf16.mxu0 0
      %632 = vmatpush1.bf16.msra.mxu0 0
      %633 = vmatprep.subr.bf16.mxu0 0
      %634 = vmatpush1.bf16.msra.mxu0 0
      %635 = vmatprep.subr.bf16.mxu0 0
      %636 = vmatpush1.bf16.msra.mxu0 0
      %637 = vmatprep.mubr.bf16.mxu0 0
      %638 = vmatmul.mubr.bf16.gmra.mrb[0].mxu0 %v578
      %v639 = vpop.f32.mrb[0].mxu0
      %v640 = vadd.f32 %v569, %v639
      %v641 = vpop.f32.mrb[0].mxu0
      %v642 = vpop.f32.mrb[0].mxu0
      %v643 = vadd.f32 %v569, %v642
      %v644 = vpop.f32.mrb[0].mxu0
      %645 = vmatprep.mubr.bf16.mxu0 0
      %646 = vmatmul.mubr.bf16.gmra.mrb[0].mxu0 %v581
      %v647 = vpop.f32.mrb[0].mxu0
      %v648 = vadd.f32 %v569, %v647
      %v649 = vpop.f32.mrb[0].mxu0
      %v650 = vpop.f32.mrb[0].mxu0
      %v651 = vadd.f32 %v569, %v650
      %v652 = vpop.f32.mrb[0].mxu0
      %653 = vmatprep.mubr.bf16.mxu0 0
      %654 = vmatmul.mubr.bf16.gmra.mrb[0].mxu0 %v584
      %v655 = vpop.f32.mrb[0].mxu0
      %v656 = vadd.f32 %v569, %v655
      %v657 = vpop.f32.mrb[0].mxu0
      %v658 = vpop.f32.mrb[0].mxu0
      %v659 = vadd.f32 %v569, %v658
      %v660 = vpop.f32.mrb[0].mxu0
      %661 = vmatprep.mubr.bf16.mxu0 0
      %662 = vmatmul.mubr.bf16.gmra.mrb[0].mxu0 %v587
      %v663 = vpop.f32.mrb[0].mxu0
      %v664 = vadd.f32 %v569, %v663
      %v665 = vpop.f32.mrb[0].mxu0
      %v666 = vpop.f32.mrb[0].mxu0
      %v667 = vadd.f32 %v569, %v666
      %v668 = vpop.f32.mrb[0].mxu0
      %669 = vmatprep.mubr.bf16.mxu0 0
      %670 = vmatmul.mubr.bf16.gmra.mrb[0].mxu0 %v590
      %v671 = vpop.f32.mrb[0].mxu0
      %v672 = vadd.f32 %v569, %v671
      %v673 = vpop.f32.mrb[0].mxu0
      %v674 = vpop.f32.mrb[0].mxu0
      %v675 = vadd.f32 %v569, %v674
      %v676 = vpop.f32.mrb[0].mxu0
      %677 = vmatprep.mubr.bf16.mxu0 0
      %678 = vmatmul.mubr.bf16.gmra.mrb[0].mxu0 %v593
      %v679 = vpop.f32.mrb[0].mxu0
      %v680 = vadd.f32 %v569, %v679
      %v681 = vpop.f32.mrb[0].mxu0
      %v682 = vpop.f32.mrb[0].mxu0
      %v683 = vadd.f32 %v569, %v682
      %v684 = vpop.f32.mrb[0].mxu0
      %685 = vmatprep.mubr.bf16.mxu0 0
      %686 = vmatmul.mubr.bf16.gmra.mrb[0].mxu0 %v596
      %v687 = vpop.f32.mrb[0].mxu0
      %v688 = vadd.f32 %v569, %v687
      %v689 = vpop.f32.mrb[0].mxu0
      %v690 = vpop.f32.mrb[0].mxu0
      %v691 = vadd.f32 %v569, %v690
      %v692 = vpop.f32.mrb[0].mxu0
      %693 = vmatprep.mubr.bf16.mxu0 0
      %694 = vmatmul.mubr.bf16.gmra.mrb[0].mxu0 %v599
      %v695 = vpop.f32.mrb[0].mxu0
      %v696 = vadd.f32 %v569, %v695
      %v697 = vpop.f32.mrb[0].mxu0
      %v698 = vpop.f32.mrb[0].mxu0
      %v699 = vadd.f32 %v569, %v698
      %v700 = vpop.f32.mrb[0].mxu0
      %701 = vdwg.mxu0
      %v702 = vmax.f32 %v640, 0.0
      %v703 = vmax.f32 %v643, 0.0
      %v704 = vmax.f32 %v648, 0.0
      %v705 = vmax.f32 %v651, 0.0
      %v706 = vmax.f32 %v656, 0.0
      %v707 = vmax.f32 %v659, 0.0
      %v708 = vmax.f32 %v664, 0.0
      %v709 = vmax.f32 %v667, 0.0
      %v710 = vmax.f32 %v672, 0.0
      %v711 = vmax.f32 %v675, 0.0
      %v712 = vmax.f32 %v680, 0.0
      %v713 = vmax.f32 %v683, 0.0
      %v714 = vmax.f32 %v688, 0.0
      %v715 = vmax.f32 %v691, 0.0
      %v716 = vmax.f32 %v696, 0.0
      %v717 = vmax.f32 %v699, 0.0
      %v718 = vpack.c.bf16 %v703, %v702
      %v719 = vpack.c.bf16 %v705, %v704
      %v720 = vpack.c.bf16 %v707, %v706
      %v721 = vpack.c.bf16 %v709, %v708
      %v722 = vpack.c.bf16 %v711, %v710
      %v723 = vpack.c.bf16 %v713, %v712
      %v724 = vpack.c.bf16 %v715, %v714
      %v725 = vpack.c.bf16 %v717, %v716
      %v726 = vld [vmem:[%s5] sm:$0x7]
      %v727 = vld [vmem:[%s6] sm:$0x1]
      %v729 = vlaneseq
      %v730 = vshrl.u32 %v729, 7
      %v731 = vsub.s32 0, %v730
      %v732 = vrot.slane %v727, %v731
      %vm734 = vcmask 39936
      %v736 = vsel %vm734, %v718, 0
      %v739 = vsel %vm734, %v719, 0
      %v742 = vsel %vm734, %v720, 0
      %v745 = vsel %vm734, %v721, 0
      %v748 = vsel %vm734, %v722, 0
      %v751 = vsel %vm734, %v723, 0
      %v754 = vsel %vm734, %v724, 0
      %v757 = vsel %vm734, %v725, 0
      %vm759 = vcmask 1041408
      %vm760 = vcmask 1042432
      %v761 = vsel %vm759, 4294967295, 65535
      %v762 = vsel %vm760, %v761, 0
      %v764 = vand.u32 %v726, %v762
      %766 = vmatprep.subr.bf16.mxu0 0
      %767 = vmatpush1.bf16.msra.mxu0 %v764
      %768 = vmatprep.subr.bf16.mxu0 0
      %769 = vmatpush1.bf16.msra.mxu0 0
      %770 = vmatprep.subr.bf16.mxu0 0
      %771 = vmatpush1.bf16.msra.mxu0 0
      %772 = vmatprep.subr.bf16.mxu0 0
      %773 = vmatpush1.bf16.msra.mxu0 0
      %774 = vmatprep.subr.bf16.mxu0 0
      %775 = vmatpush1.bf16.msra.mxu0 0
      %776 = vmatprep.subr.bf16.mxu0 0
      %777 = vmatpush1.bf16.msra.mxu0 0
      %778 = vmatprep.subr.bf16.mxu0 0
      %779 = vmatpush1.bf16.msra.mxu0 0
      %780 = vmatprep.subr.bf16.mxu0 0
      %781 = vmatpush1.bf16.msra.mxu0 0
      %782 = vmatprep.subr.bf16.mxu0 0
      %783 = vmatpush1.bf16.msra.mxu0 0
      %784 = vmatprep.subr.bf16.mxu0 0
      %785 = vmatpush1.bf16.msra.mxu0 0
      %786 = vmatprep.subr.bf16.mxu0 0
      %787 = vmatpush1.bf16.msra.mxu0 0
      %788 = vmatprep.subr.bf16.mxu0 0
      %789 = vmatpush1.bf16.msra.mxu0 0
      %790 = vmatprep.subr.bf16.mxu0 0
      %791 = vmatpush1.bf16.msra.mxu0 0
      %792 = vmatprep.subr.bf16.mxu0 0
      %793 = vmatpush1.bf16.msra.mxu0 0
      %794 = vmatprep.subr.bf16.mxu0 0
      %795 = vmatpush1.bf16.msra.mxu0 0
      %796 = vmatprep.subr.bf16.mxu0 0
      %797 = vmatpush1.bf16.msra.mxu0 0
      %798 = vmatprep.mubr.bf16.mxu0 0
      %799 = vmatmul.mubr.bf16.gmra.mrb[0].mxu0 %v736
      %v800 = vpop.f32.mrb[0].mxu0
      %v801 = vadd.f32 %v732, %v800
      %v802 = vpop.f32.mrb[0].mxu0
      %v803 = vpop.f32.mrb[0].mxu0
      %v804 = vadd.f32 %v732, %v803
      %v805 = vpop.f32.mrb[0].mxu0
      %806 = vmatprep.mubr.bf16.mxu0 0
      %807 = vmatmul.mubr.bf16.gmra.mrb[0].mxu0 %v739
      %v808 = vpop.f32.mrb[0].mxu0
      %v809 = vadd.f32 %v732, %v808
      %v810 = vpop.f32.mrb[0].mxu0
      %v811 = vpop.f32.mrb[0].mxu0
      %v812 = vadd.f32 %v732, %v811
      %v813 = vpop.f32.mrb[0].mxu0
      %814 = vmatprep.mubr.bf16.mxu0 0
      %815 = vmatmul.mubr.bf16.gmra.mrb[0].mxu0 %v742
      %v816 = vpop.f32.mrb[0].mxu0
      %v817 = vadd.f32 %v732, %v816
      %v818 = vpop.f32.mrb[0].mxu0
      %v819 = vpop.f32.mrb[0].mxu0
      %v820 = vadd.f32 %v732, %v819
      %v821 = vpop.f32.mrb[0].mxu0
      %822 = vmatprep.mubr.bf16.mxu0 0
      %823 = vmatmul.mubr.bf16.gmra.mrb[0].mxu0 %v745
      %v824 = vpop.f32.mrb[0].mxu0
      %v825 = vadd.f32 %v732, %v824
      %v826 = vpop.f32.mrb[0].mxu0
      %v827 = vpop.f32.mrb[0].mxu0
      %v828 = vadd.f32 %v732, %v827
      %v829 = vpop.f32.mrb[0].mxu0
      %830 = vmatprep.mubr.bf16.mxu0 0
      %831 = vmatmul.mubr.bf16.gmra.mrb[0].mxu0 %v748
      %v832 = vpop.f32.mrb[0].mxu0
      %v833 = vadd.f32 %v732, %v832
      %v834 = vpop.f32.mrb[0].mxu0
      %v835 = vpop.f32.mrb[0].mxu0
      %v836 = vadd.f32 %v732, %v835
      %v837 = vpop.f32.mrb[0].mxu0
      %838 = vmatprep.mubr.bf16.mxu0 0
      %839 = vmatmul.mubr.bf16.gmra.mrb[0].mxu0 %v751
      %v840 = vpop.f32.mrb[0].mxu0
      %v841 = vadd.f32 %v732, %v840
      %v842 = vpop.f32.mrb[0].mxu0
      %v843 = vpop.f32.mrb[0].mxu0
      %v844 = vadd.f32 %v732, %v843
      %v845 = vpop.f32.mrb[0].mxu0
      %846 = vmatprep.mubr.bf16.mxu0 0
      %847 = vmatmul.mubr.bf16.gmra.mrb[0].mxu0 %v754
      %v848 = vpop.f32.mrb[0].mxu0
      %v849 = vadd.f32 %v732, %v848
      %v850 = vpop.f32.mrb[0].mxu0
      %v851 = vpop.f32.mrb[0].mxu0
      %v852 = vadd.f32 %v732, %v851
      %v853 = vpop.f32.mrb[0].mxu0
      %854 = vmatprep.mubr.bf16.mxu0 0
      %855 = vmatmul.mubr.bf16.gmra.mrb[0].mxu0 %v757
      %v856 = vpop.f32.mrb[0].mxu0
      %v857 = vadd.f32 %v732, %v856
      %v858 = vpop.f32.mrb[0].mxu0
      %v859 = vpop.f32.mrb[0].mxu0
      %v860 = vadd.f32 %v732, %v859
      %v861 = vpop.f32.mrb[0].mxu0
      %862 = vdwg.mxu0
      %v863 = vmax.f32 %v801, 0.0
      %v864 = vmax.f32 %v804, 0.0
      %v865 = vmax.f32 %v809, 0.0
      %v866 = vmax.f32 %v812, 0.0
      %v867 = vmax.f32 %v817, 0.0
      %v868 = vmax.f32 %v820, 0.0
      %v869 = vmax.f32 %v825, 0.0
      %v870 = vmax.f32 %v828, 0.0
      %v871 = vmax.f32 %v833, 0.0
      %v872 = vmax.f32 %v836, 0.0
      %v873 = vmax.f32 %v841, 0.0
      %v874 = vmax.f32 %v844, 0.0
      %v875 = vmax.f32 %v849, 0.0
      %v876 = vmax.f32 %v852, 0.0
      %v877 = vmax.f32 %v857, 0.0
      %v878 = vmax.f32 %v860, 0.0
      %v879 = vpack.c.bf16 %v864, %v863
      %v880 = vpack.c.bf16 %v866, %v865
      %v881 = vpack.c.bf16 %v868, %v867
      %v882 = vpack.c.bf16 %v870, %v869
      %v883 = vpack.c.bf16 %v872, %v871
      %v884 = vpack.c.bf16 %v874, %v873
      %v885 = vpack.c.bf16 %v876, %v875
      %v886 = vpack.c.bf16 %v878, %v877
      %v887 = vld [vmem:[%s7] sm:$0x3]
      %v888 = vld [vmem:[#allocation2] sm:$0x1]
      %v890 = vlaneseq
      %v891 = vshrl.u32 %v890, 7
      %v892 = vsub.s32 0, %v891
      %v893 = vrot.slane %v888, %v892
      %vm895 = vcmask 23552
      %v897 = vsel %vm895, %v879, 0
      %v900 = vsel %vm895, %v880, 0
      %v903 = vsel %vm895, %v881, 0
      %v906 = vsel %vm895, %v882, 0
      %v909 = vsel %vm895, %v883, 0
      %v912 = vsel %vm895, %v884, 0
      %v915 = vsel %vm895, %v885, 0
      %v918 = vsel %vm895, %v886, 0
      %vm920 = vcmask 1040384
      %v921 = vsel %vm920, 4294967295, 65535
      %v922 = vsel %vm759, %v921, 0
      %v924 = vand.u32 %v887, %v922
      %926 = vmatprep.subr.bf16.mxu0 0
      %927 = vmatpush1.bf16.msra.mxu0 %v924
      %928 = vmatprep.subr.bf16.mxu0 0
      %929 = vmatpush1.bf16.msra.mxu0 0
      %930 = vmatprep.subr.bf16.mxu0 0
      %931 = vmatpush1.bf16.msra.mxu0 0
      %932 = vmatprep.subr.bf16.mxu0 0
      %933 = vmatpush1.bf16.msra.mxu0 0
      %934 = vmatprep.subr.bf16.mxu0 0
      %935 = vmatpush1.bf16.msra.mxu0 0
      %936 = vmatprep.subr.bf16.mxu0 0
      %937 = vmatpush1.bf16.msra.mxu0 0
      %938 = vmatprep.subr.bf16.mxu0 0
      %939 = vmatpush1.bf16.msra.mxu0 0
      %940 = vmatprep.subr.bf16.mxu0 0
      %941 = vmatpush1.bf16.msra.mxu0 0
      %942 = vmatprep.subr.bf16.mxu0 0
      %943 = vmatpush1.bf16.msra.mxu0 0
      %944 = vmatprep.subr.bf16.mxu0 0
      %945 = vmatpush1.bf16.msra.mxu0 0
      %946 = vmatprep.subr.bf16.mxu0 0
      %947 = vmatpush1.bf16.msra.mxu0 0
      %948 = vmatprep.subr.bf16.mxu0 0
      %949 = vmatpush1.bf16.msra.mxu0 0
      %950 = vmatprep.subr.bf16.mxu0 0
      %951 = vmatpush1.bf16.msra.mxu0 0
      %952 = vmatprep.subr.bf16.mxu0 0
      %953 = vmatpush1.bf16.msra.mxu0 0
      %954 = vmatprep.subr.bf16.mxu0 0
      %955 = vmatpush1.bf16.msra.mxu0 0
      %956 = vmatprep.subr.bf16.mxu0 0
      %957 = vmatpush1.bf16.msra.mxu0 0
      %958 = vmatprep.mubr.bf16.mxu0 0
      %959 = vmatmul.mubr.bf16.gmra.mrb[0].mxu0 %v897
      %v960 = vpop.f32.mrb[0].mxu0
      %v961 = vadd.f32 %v893, %v960
      %v962 = vpop.f32.mrb[0].mxu0
      %v963 = vpop.f32.mrb[0].mxu0
      %v964 = vadd.f32 %v893, %v963
      %v965 = vpop.f32.mrb[0].mxu0
      %966 = vmatprep.mubr.bf16.mxu0 0
      %967 = vmatmul.mubr.bf16.gmra.mrb[0].mxu0 %v900
      %v968 = vpop.f32.mrb[0].mxu0
      %v969 = vadd.f32 %v893, %v968
      %v970 = vpop.f32.mrb[0].mxu0
      %v971 = vpop.f32.mrb[0].mxu0
      %v972 = vadd.f32 %v893, %v971
      %v973 = vpop.f32.mrb[0].mxu0
      %974 = vmatprep.mubr.bf16.mxu0 0
      %975 = vmatmul.mubr.bf16.gmra.mrb[0].mxu0 %v903
      %v976 = vpop.f32.mrb[0].mxu0
      %v977 = vadd.f32 %v893, %v976
      %v978 = vpop.f32.mrb[0].mxu0
      %v979 = vpop.f32.mrb[0].mxu0
      %v980 = vadd.f32 %v893, %v979
      %v981 = vpop.f32.mrb[0].mxu0
      %982 = vmatprep.mubr.bf16.mxu0 0
      %983 = vmatmul.mubr.bf16.gmra.mrb[0].mxu0 %v906
      %v984 = vpop.f32.mrb[0].mxu0
      %v985 = vadd.f32 %v893, %v984
      %v986 = vpop.f32.mrb[0].mxu0
      %v987 = vpop.f32.mrb[0].mxu0
      %v988 = vadd.f32 %v893, %v987
      %v989 = vpop.f32.mrb[0].mxu0
      %990 = vmatprep.mubr.bf16.mxu0 0
      %991 = vmatmul.mubr.bf16.gmra.mrb[0].mxu0 %v909
      %v992 = vpop.f32.mrb[0].mxu0
      %v993 = vadd.f32 %v893, %v992
      %v994 = vpop.f32.mrb[0].mxu0
      %v995 = vpop.f32.mrb[0].mxu0
      %v996 = vadd.f32 %v893, %v995
      %v997 = vpop.f32.mrb[0].mxu0
      %998 = vmatprep.mubr.bf16.mxu0 0
      %999 = vmatmul.mubr.bf16.gmra.mrb[0].mxu0 %v912
      %v1000 = vpop.f32.mrb[0].mxu0
      %v1001 = vadd.f32 %v893, %v1000
      %v1002 = vpop.f32.mrb[0].mxu0
      %v1003 = vpop.f32.mrb[0].mxu0
      %v1004 = vadd.f32 %v893, %v1003
      %v1005 = vpop.f32.mrb[0].mxu0
      %1006 = vmatprep.mubr.bf16.mxu0 0
      %1007 = vmatmul.mubr.bf16.gmra.mrb[0].mxu0 %v915
      %v1008 = vpop.f32.mrb[0].mxu0
      %v1009 = vadd.f32 %v893, %v1008
      %v1010 = vpop.f32.mrb[0].mxu0
      %v1011 = vpop.f32.mrb[0].mxu0
      %v1012 = vadd.f32 %v893, %v1011
      %v1013 = vpop.f32.mrb[0].mxu0
      %1014 = vmatprep.mubr.bf16.mxu0 0
      %1015 = vmatmul.mubr.bf16.gmra.mrb[0].mxu0 %v918
      %v1016 = vpop.f32.mrb[0].mxu0
      %v1017 = vadd.f32 %v893, %v1016
      %v1018 = vpop.f32.mrb[0].mxu0
      %v1019 = vpop.f32.mrb[0].mxu0
      %v1020 = vadd.f32 %v893, %v1019
      %v1021 = vpop.f32.mrb[0].mxu0
      %1022 = vdwg.mxu0
      %vm1023 = vcmask 7168
      %1024 = vst.msk [vmem:[%s336] sm:$0xff] %vm1023, %v961
      %1025 = vst.msk [vmem:[%s336 + $0x8] sm:$0xff] %vm1023, %v964
      %1026 = vst.msk [vmem:[%s336 + $0x10] sm:$0xff] %vm1023, %v969
      %1027 = vst.msk [vmem:[%s336 + $0x18] sm:$0xff] %vm1023, %v972
      %1028 = vst.msk [vmem:[%s336 + $0x20] sm:$0xff] %vm1023, %v977
      %1029 = vst.msk [vmem:[%s336 + $0x28] sm:$0xff] %vm1023, %v980
      %1030 = vst.msk [vmem:[%s336 + $0x30] sm:$0xff] %vm1023, %v985
      %1031 = vst.msk [vmem:[%s336 + $0x38] sm:$0xff] %vm1023, %v988
      %1032 = vst.msk [vmem:[%s336 + $0x40] sm:$0xff] %vm1023, %v993
      %1033 = vst.msk [vmem:[%s336 + $0x48] sm:$0xff] %vm1023, %v996
      %1034 = vst.msk [vmem:[%s336 + $0x50] sm:$0xff] %vm1023, %v1001
      %1035 = vst.msk [vmem:[%s336 + $0x58] sm:$0xff] %vm1023, %v1004
      %1036 = vst.msk [vmem:[%s336 + $0x60] sm:$0xff] %vm1023, %v1009
      %1037 = vst.msk [vmem:[%s336 + $0x68] sm:$0xff] %vm1023, %v1012
      %1038 = vst.msk [vmem:[%s336 + $0x70] sm:$0xff] %vm1023, %v1017
      %1039 = vst.msk [vmem:[%s336 + $0x78] sm:$0xff] %vm1023, %v1020
      %s1040 = smul.u32 16, %s22
      %p1041 = scmp.lt.s32.totalorder %s1040, 31
      %s1042 = scalar_select %p1041, %s1040, 31
      %s1043 = smul.addr %s1042, 8
      %s1044 = scalar_lea.vmem %s9, %s1043
      // Predicated region
      $region57: #{tpu_custom_call.1} parent=55 // pred_check
        %p1045 = pneg %p234
      $region58: #{tpu_custom_call.1} parent=55 // pred_check_branch
        %1047 = sbr.rel (%p1045) target = $region60
      $region59: #{tpu_custom_call.1} parent=55 // pred_region
        %s1048 = smul.u32 16, %s22
      $region60: #{tpu_custom_call.1} parent=55 // pred_fallthru
        _
    $region56: #{tpu_custom_call.1} parent=5 // pred_fallthru
      _
    %p1049 = scmp.le.s32.totalorder 2, %s17
    // Predicated region
    $region61: #{tpu_custom_call.1} parent=5 // pred_check
      %p1050 = pneg %p1049
    $region62: #{tpu_custom_call.1} parent=5 // pred_check_branch
      %1052 = sbr.rel (%p1050) target = $region64
    $region63: #{tpu_custom_call.1} parent=5 // pred_region
      %s1053 = ssub.s32 %s17, 2
      // Predicated region
      $region65: #{tpu_custom_call.1} parent=63 // pred_check
        %p1054 = pneg %p240
      $region66: #{tpu_custom_call.1} parent=63 // pred_check_branch
        %1056 = sbr.rel (%p1054) target = $region68
      $region67: #{tpu_custom_call.1} parent=63 // pred_region
        %s1057 = smul.u32 16, %s23
        %p1058 = scmp.lt.s32.totalorder %s1057, 31
        %s1059 = scalar_select %p1058, %s1057, 31
        %s1060 = smul.addr %s1059, 8
        %s1061 = scalar_lea.vmem %s9, %s1060
      $region68: #{tpu_custom_call.1} parent=63 // pred_fallthru
        _
    $region64: #{tpu_custom_call.1} parent=5 // pred_fallthru
      _
  $region6: #{tpu_custom_call.1} parent=0 // loop_footer
    %s21 = sadd.s32 1, %s17
  $region7: #{tpu_custom_call.1} parent=0 // loop_footer_branch
    %16 = sbr.rel target = $region3
  $region8: #{tpu_custom_call.1} parent=0 // loop_exit
    _

</llo_original>
